<compile_context>
chip_gen: v7x
topology: tpu7x:2x2x1
jax: 0.10.0
libtpu: 0.0.40
codegen_flags: <defaults>
</compile_context>

<pallas_src>
import functools

import jax
import jax.numpy as jnp
from jax.experimental import pallas as pl
from jax.experimental.pallas import tpu as pltpu

_EPS = 1e-6  # matches F.pairwise_distance default eps (added to the difference)


def _round_up(x, m):
    return ((x + m - 1) // m) * m


def _loss_partial_kernel(o1_ref, o2_ref, w_ref, out_ref, *,
                         total_rows, tile_rows, needs_mask):
    # Upcast to f32 inside the kernel so bf16 inputs are supported and the
    # squares/accumulation stay in f32.
    o1 = o1_ref[...].astype(jnp.float32)
    o2 = o2_ref[...].astype(jnp.float32)
    w = w_ref[...].astype(jnp.float32)

    d1 = o1 - w + _EPS
    d2 = o2 - w + _EPS
    s = d1 * d1 + d2 * d2                      # VPU; one combined tile of squared dists

    if needs_mask:
        # Zero out rows of the (padded) last tile that fall past the real batch.
        i = pl.program_id(0)
        row_ids = i * tile_rows + jax.lax.broadcasted_iota(jnp.int32, s.shape, 0)
        s = jnp.where(row_ids < total_rows, s, 0.0)

    # Single full-tile reduction -> per-tile partial sum (divide-by-B is in the wrapper).
    out_ref[...] = jnp.sum(s).reshape(1, 1)


def _pick_tile_rows(batch, feat, itemsize):
    # 3 inputs x 2 pipeline buffers x tile_rows x feat x itemsize must fit with headroom.
    # ~12 MiB keeps us inside v5e's 16 MiB default scoped VMEM; v6e/v7x have more slack.
    budget_bytes = 12 * 1024 * 1024
    per_row_bytes = 3 * 2 * feat * itemsize
    tb = budget_bytes // max(per_row_bytes, 1)
    tb = max(8, min(1024, (tb // 8) * 8))      # sublane-aligned, capped
    return int(min(tb, _round_up(batch, 8)))


def cross_modal_latent_loss(output1, output2, w2vec, *, tile_rows=None):
    """output1, output2, w2vec: (B, D) float32/bfloat16 arrays. Returns scalar f32 loss."""
    assert output1.shape == output2.shape == w2vec.shape
    assert output1.ndim == 2
    b, d = output1.shape

    itemsize = jnp.dtype(output1.dtype).itemsize
    if tile_rows is None:
        tile_rows = _pick_tile_rows(b, d, itemsize)
    num_tiles = pl.cdiv(b, tile_rows)
    needs_mask = (b % tile_rows) != 0

    kernel = functools.partial(
        _loss_partial_kernel,
        total_rows=b,
        tile_rows=tile_rows,
        needs_mask=needs_mask,
    )

    partials = pl.pallas_call(
        kernel,
        out_shape=jax.ShapeDtypeStruct((num_tiles, 1), jnp.float32),
        grid=(num_tiles,),
        in_specs=[
            pl.BlockSpec((tile_rows, d), lambda i: (i, 0)),
            pl.BlockSpec((tile_rows, d), lambda i: (i, 0)),
            pl.BlockSpec((tile_rows, d), lambda i: (i, 0)),
        ],
        out_specs=pl.BlockSpec((1, 1), lambda i: (i, 0)),
        compiler_params=pltpu.CompilerParams(
            dimension_semantics=("parallel",),
        ),
    )(output1, output2, w2vec)

    # Final tiny reduction + divide by the TOTAL batch size, once, in the wrapper.
    return jnp.sum(partials) / jnp.float32(b)


def _reference(output1, output2, w2vec):
    # pure-JAX reference mirroring torch F.pairwise_distance semantics
    o1 = output1.astype(jnp.float32)
    o2 = output2.astype(jnp.float32)
    w = w2vec.astype(jnp.float32)
    d1 = jnp.sqrt(jnp.sum((o1 - w + _EPS) ** 2, axis=-1, keepdims=True))
    d2 = jnp.sqrt(jnp.sum((o2 - w + _EPS) ** 2, axis=-1, keepdims=True))
    return jnp.mean(d1 ** 2 + d2 ** 2)


if __name__ == "__main__":
    key = jax.random.PRNGKey(0)

    # --- main test: small, sublane-aligned batch, f32 inputs ---
    B, D = 8, 128
    k1, k2, k3, k4, k5, k6 = jax.random.split(key, 6)
    output1 = jax.random.normal(k1, (B, D), dtype=jnp.float32)
    output2 = jax.random.normal(k2, (B, D), dtype=jnp.float32)
    w2vec = jax.random.normal(k3, (B, D), dtype=jnp.float32)

    loss = cross_modal_latent_loss(output1, output2, w2vec)
    jax.block_until_ready(loss)
    ref = _reference(output1, output2, w2vec)
    assert jnp.allclose(loss, ref, rtol=1e-5, atol=1e-5), (loss, ref)

    # --- ragged batch test: exercises the in-kernel row mask (padded edge tile) ---
    B2 = 13
    o1b = jax.random.normal(k4, (B2, D), dtype=jnp.float32)
    o2b = jax.random.normal(k5, (B2, D), dtype=jnp.float32)
    wb = jax.random.normal(k6, (B2, D), dtype=jnp.float32)
    loss2 = cross_modal_latent_loss(o1b, o2b, wb)
    jax.block_until_ready(loss2)
    ref2 = _reference(o1b, o2b, wb)
    assert jnp.allclose(loss2, ref2, rtol=1e-5, atol=1e-5), (loss2, ref2)

    # --- bf16 input path (upcast to f32 inside kernel) ---
    loss_bf16 = cross_modal_latent_loss(
        output1.astype(jnp.bfloat16),
        output2.astype(jnp.bfloat16),
        w2vec.astype(jnp.bfloat16),
    )
    jax.block_until_ready(loss_bf16)
    ref_bf16 = _reference(
        output1.astype(jnp.bfloat16),
        output2.astype(jnp.bfloat16),
        w2vec.astype(jnp.bfloat16),
    )
    assert jnp.allclose(loss_bf16, ref_bf16, rtol=2e-2, atol=2e-2), (loss_bf16, ref_bf16)

    print("KERNEL_OK")
</pallas_src>

<mosaic_0001>
module attributes {stable_mosaic.version = 11 : i64} {
  func.func @_loss_partial_kernel(%arg0: i32, %arg1: memref<8x128xf32, #tpu.memory_space<vmem>>, %arg2: memref<8x128xf32, #tpu.memory_space<vmem>>, %arg3: memref<8x128xf32, #tpu.memory_space<vmem>>, %arg4: memref<1x1xf32, #tpu.memory_space<vmem>>) attributes {dimension_semantics = [#tpu.dimension_semantics<parallel>], iteration_bounds = array<i64: 1>, scalar_prefetch = 0 : i64, scratch_operands = 0 : i64, tpu.core_type = #tpu.core_type<tc>, window_params = [{transform_indices = @transform_0, window_bounds = array<i64: 8, 128>}, {transform_indices = @transform_1, window_bounds = array<i64: 8, 128>}, {transform_indices = @transform_2, window_bounds = array<i64: 8, 128>}, {transform_indices = @transform_3, window_bounds = array<i64: 1, 1>}]} {
    %c0 = arith.constant 0 : index
    %c0_0 = arith.constant 0 : index
    %0 = vector.load %arg1[%c0, %c0_0] : memref<8x128xf32, #tpu.memory_space<vmem>>, vector<8x128xf32>
    %c0_1 = arith.constant 0 : index
    %c0_2 = arith.constant 0 : index
    %1 = vector.load %arg2[%c0_1, %c0_2] : memref<8x128xf32, #tpu.memory_space<vmem>>, vector<8x128xf32>
    %c0_3 = arith.constant 0 : index
    %c0_4 = arith.constant 0 : index
    %2 = vector.load %arg3[%c0_3, %c0_4] : memref<8x128xf32, #tpu.memory_space<vmem>>, vector<8x128xf32>
    %3 = arith.subf %0, %2 : vector<8x128xf32>
    %cst = arith.constant 9.99999997E-7 : f32
    %4 = vector.broadcast %cst : f32 to vector<8x128xf32>
    %5 = arith.addf %3, %4 : vector<8x128xf32>
    %6 = arith.subf %1, %2 : vector<8x128xf32>
    %cst_5 = arith.constant 9.99999997E-7 : f32
    %7 = vector.broadcast %cst_5 : f32 to vector<8x128xf32>
    %8 = arith.addf %6, %7 : vector<8x128xf32>
    %9 = arith.mulf %5, %5 : vector<8x128xf32>
    %10 = arith.mulf %8, %8 : vector<8x128xf32>
    %11 = arith.addf %9, %10 : vector<8x128xf32>
    %12 = vector.shape_cast %11 : vector<8x128xf32> to vector<1x8x128xf32>
    %cst_6 = arith.constant dense<0.000000e+00> : vector<1xf32>
    %13 = vector.multi_reduction <add>, %12, %cst_6 [1, 2] : vector<1x8x128xf32> to vector<1xf32>
    %14 = vector.shape_cast %13 : vector<1xf32> to vector<1x1x1xf32>
    %15 = vector.extract %14[0, 0, 0] : f32 from vector<1x1x1xf32>
    %16 = vector.broadcast %15 : f32 to vector<1x1xf32>
    %c0_7 = arith.constant 0 : index
    %c0_8 = arith.constant 0 : index
    %17 = vector.load %arg4[%c0_7, %c0_8] : memref<1x1xf32, #tpu.memory_space<vmem>>, vector<1x1xf32>
    tpu.vector_store %arg4[%c0_7, %c0_8], %16 {strides = array<i32>} : memref<1x1xf32, #tpu.memory_space<vmem>>, vector<1x1xf32>,
    return
  }
  func.func @transform_0(%arg0: i32) -> (i32, i32) {
    %c0_i32 = arith.constant 0 : i32
    %c0_i32_0 = arith.constant 0 : i32
    return %arg0, %c0_i32 : i32, i32
  }
  func.func @transform_1(%arg0: i32) -> (i32, i32) {
    %c0_i32 = arith.constant 0 : i32
    %c0_i32_0 = arith.constant 0 : i32
    return %arg0, %c0_i32 : i32, i32
  }
  func.func @transform_2(%arg0: i32) -> (i32, i32) {
    %c0_i32 = arith.constant 0 : i32
    %c0_i32_0 = arith.constant 0 : i32
    return %arg0, %c0_i32 : i32, i32
  }
  func.func @transform_3(%arg0: i32) -> (i32, i32) {
    %c0_i32 = arith.constant 0 : i32
    %c0_i32_0 = arith.constant 0 : i32
    return %arg0, %c0_i32 : i32, i32
  }
}

</mosaic_0001>

<llo_original>
// kernel: tpu_custom_call.1
$region0: #{tpu_custom_call.1}
  #allocation0 [shape = 'u32[]', space=smem, size = 0x4, offset = 0x4, fixed_abs, tag = 'smem constant byte address 0x4 - core index']
  #allocation1 [shape = 'u32[144,128]{1,0:T(1,128)}', space=vmem, size = 0x12000, scoped, tag = 'internal scratch']
  %s0 = inlined_call_operand.hbm [shape: f32[8,128], index: 0, kind: input, shape index: {}]
  %s1 = inlined_call_operand.hbm [shape: f32[8,128], index: 1, kind: input, shape index: {}]
  %s2 = inlined_call_operand.hbm [shape: f32[8,128], index: 2, kind: input, shape index: {}]
  %s3 = inlined_call_operand.hbm [shape: f32[1,1], index: 3, kind: output, shape index: {}]
  %s4 = sld [smem:[#allocation0]]
  $region34: #{tpu_custom_call.1} parent=0
    _
  %s6 = ssub.s32 1, %s4
  %s7 = scalar_select 0, %s6, %s4
  $region1: #{tpu_custom_call.1} parent=0
    #allocation2 [shape = 'u8[4096]{0}', space=vmem, size = 0x1000, scoped, tag = 'input window, operand 0, single buffered']
    #allocation3 [shape = 's32[1]{0}', space=sflag, size = 0x4, scoped, tag = 'scoped memory for tpu_custom_call.1']
    #allocation4 [shape = 's32[1]{0}', space=sflag, size = 0x4, scoped, tag = 'scoped memory for tpu_custom_call.1']
    #allocation5 [shape = 'u8[4096]{0}', space=vmem, size = 0x1000, scoped, tag = 'input window, operand 1, single buffered']
    #allocation6 [shape = 's32[1]{0}', space=sflag, size = 0x4, scoped, tag = 'scoped memory for tpu_custom_call.1']
    #allocation7 [shape = 'u8[4096]{0}', space=vmem, size = 0x1000, scoped, tag = 'input window, operand 2, single buffered']
    #allocation8 [shape = 'u8[512]{0}', space=vmem, size = 0x400, scoped, tag = 'output window, operand 0, single buffered']
    %8 = vsyncpa [#allocation3], 0
    %9 = vsyncpa [#allocation6], 0
    %10 = vsyncpa [#allocation4], 0
    // Predicated region
    $region2: #{tpu_custom_call.1} parent=1 // pred_check
      _
    $region3: #{tpu_custom_call.1} parent=1 // pred_check_branch
      %12 = sbr.rel (0) target = $region5
    $region4: #{tpu_custom_call.1} parent=1 // pred_region
      %s14 = ssub.s32 128, 128
      %15 = vsyncadd [#allocation3], %s14
      %s17 = sshll.u32 [#allocation2], 4
      %s18 = int_to_ptr.vmem [resolvable:$true] %s17
      %20 = dma.hbm_to_vmem [thread:$0]  %s0, 128, %s18, [#allocation3]
    $region5: #{tpu_custom_call.1} parent=1 // pred_fallthru
      _
    // Predicated region
    $region6: #{tpu_custom_call.1} parent=1 // pred_check
      _
    $region7: #{tpu_custom_call.1} parent=1 // pred_check_branch
      %22 = sbr.rel (0) target = $region9
    $region8: #{tpu_custom_call.1} parent=1 // pred_region
      %s24 = ssub.s32 128, 128
      %25 = vsyncadd [#allocation6], %s24
      %s27 = sshll.u32 [#allocation5], 4
      %s28 = int_to_ptr.vmem [resolvable:$true] %s27
      %30 = dma.hbm_to_vmem [thread:$0]  %s1, 128, %s28, [#allocation6]
    $region9: #{tpu_custom_call.1} parent=1 // pred_fallthru
      _
    // Predicated region
    $region10: #{tpu_custom_call.1} parent=1 // pred_check
      _
    $region11: #{tpu_custom_call.1} parent=1 // pred_check_branch
      %32 = sbr.rel (0) target = $region13
    $region12: #{tpu_custom_call.1} parent=1 // pred_region
      %s34 = ssub.s32 128, 128
      %35 = vsyncadd [#allocation6], %s34
      %s37 = sshll.u32 [#allocation7], 4
      %s38 = int_to_ptr.vmem [resolvable:$true] %s37
      %40 = dma.hbm_to_vmem [thread:$0]  %s2, 128, %s38, [#allocation6]
    $region13: #{tpu_custom_call.1} parent=1 // pred_fallthru
      _
    // Predicated region
    $region14: #{tpu_custom_call.1} parent=1 // pred_check
      _
    $region15: #{tpu_custom_call.1} parent=1 // pred_check_branch
      %42 = sbr.rel (0) target = $region17
    $region16: #{tpu_custom_call.1} parent=1 // pred_region
      %43 = dma.done [#allocation3], 128
    $region17: #{tpu_custom_call.1} parent=1 // pred_fallthru
      _
    // Predicated region
    $region18: #{tpu_custom_call.1} parent=1 // pred_check
      _
    $region19: #{tpu_custom_call.1} parent=1 // pred_check_branch
      %45 = sbr.rel (0) target = $region21
    $region20: #{tpu_custom_call.1} parent=1 // pred_region
      %46 = dma.done [#allocation6], 128
    $region21: #{tpu_custom_call.1} parent=1 // pred_fallthru
      _
    // Predicated region
    $region22: #{tpu_custom_call.1} parent=1 // pred_check
      _
    $region23: #{tpu_custom_call.1} parent=1 // pred_check_branch
      %48 = sbr.rel (0) target = $region25
    $region24: #{tpu_custom_call.1} parent=1 // pred_region
      %49 = dma.done [#allocation6], 128
    $region25: #{tpu_custom_call.1} parent=1 // pred_fallthru
      _
    %v50 = vld [vmem:[#allocation2] sm:$0xff]
    %v51 = vld [vmem:[#allocation5] sm:$0xff]
    %v52 = vld [vmem:[#allocation7] sm:$0xff]
    %v53 = vsub.f32 %v50, %v52
    %v54 = vadd.f32 %v53, 1e-06
    %v55 = vsub.f32 %v51, %v52
    %v56 = vadd.f32 %v55, 1e-06
    %v57 = vmul.f32 %v54, %v54
    %v58 = vmul.f32 %v56, %v56
    %v59 = vadd.f32 %v57, %v58
    %60 = vadd.xlane.f32.xlu0 %v59
    %v61 = vpop.xlane.xlu0 %60
    %v62 = vrot.slane %v61, 4
    %v63 = vadd.f32 %v61, %v62
    %v64 = vrot.slane %v63, 2
    %v65 = vadd.f32 %v63, %v64
    %v66 = vrot.slane %v65, 1
    %v67 = vadd.f32 %v65, %v66
    %s68 = vtos %v67
    %v69 = vstv %s68
    %vm70 = vcmask 0
    %71 = vst.msk [vmem:[#allocation8] sm:$0x1] %vm70, %v69
    // Predicated region
    $region26: #{tpu_custom_call.1} parent=1 // pred_check
      _
    $region27: #{tpu_custom_call.1} parent=1 // pred_check_branch
      %73 = sbr.rel (0) target = $region29
    $region28: #{tpu_custom_call.1} parent=1 // pred_region
      %s75 = ssub.s32 16, 16
      %76 = vsyncadd [#allocation4], %s75
      %s78 = sshll.u32 [#allocation8], 4
      %s79 = int_to_ptr.vmem [resolvable:$true] %s78
      %81 = dma.vmem_to_hbm [thread:$0]  %s79, 16, %s3, [#allocation4]
    $region29: #{tpu_custom_call.1} parent=1 // pred_fallthru
      _
    // Predicated region
    $region30: #{tpu_custom_call.1} parent=1 // pred_check
      _
    $region31: #{tpu_custom_call.1} parent=1 // pred_check_branch
      %83 = sbr.rel (0) target = $region33
    $region32: #{tpu_custom_call.1} parent=1 // pred_region
      %84 = dma.done [#allocation4], 16
    $region33: #{tpu_custom_call.1} parent=1 // pred_fallthru
      _
    %85 = vsyncpa [#allocation3], 1
    %86 = vsyncpa [#allocation6], 1
    %87 = vsyncpa [#allocation4], 1

</llo_original>
